<compile_context>
chip_gen: v5e
topology: v5e:2x2
jax: 0.10.0
libtpu: 0.0.40
codegen_flags: <defaults>
</compile_context>

<pallas_src>
import functools
import math

import jax
import jax.numpy as jnp
from jax import lax
from jax.experimental import pallas as pl
from jax.experimental.pallas import tpu as pltpu


_LANE = 128          # lane width: output channel tiles are multiples of this
_SUBLANE = 8         # sublane width: M tiles are multiples of this
_MAX_UNGRIDDED_K = 2048   # contract K in one shot below this, else grid it
_K_TILE = 512
_M_TILE = 512        # 512-row tiles: fits v7x scoped VMEM, amortizes grid cost


def _round_up(x, m):
    return (x + m - 1) // m * m


# ---------------------------------------------------------------------------
# Pallas kernel: fused (patches @ folded_weight) + bias + ReLU
#   patches tile: (tm, tk) bf16   weight tile: (tk, tn) bf16
#   bias tile:    (1, tn)  f32    output tile: (tm, tn) f32
# K axis is the innermost ("arbitrary") grid axis; acc_ref persists across it.
# ---------------------------------------------------------------------------
def _conv_bn_relu_kernel(x_ref, w_ref, b_ref, o_ref, acc_ref):
    @pl.when(pl.program_id(2) == 0)
    def _init():
        acc_ref[...] = jnp.zeros_like(acc_ref)

    acc_ref[...] += jnp.dot(x_ref[...], w_ref[...],
                            preferred_element_type=jnp.float32)

    @pl.when(pl.program_id(2) == pl.num_programs(2) - 1)
    def _finish():
        # BN scale is already folded into w; only the bias add + ReLU remain.
        o_ref[...] = jnp.maximum(acc_ref[...] + b_ref[...], 0.0
                                 ).astype(o_ref.dtype)


def _fused_conv_bn_relu_matmul(patches, w_packed, b_packed, *, tm, tn, tk):
    m_pad, k_pad = patches.shape
    _, n_pad = w_packed.shape
    grid = (m_pad // tm, n_pad // tn, k_pad // tk)
    return pl.pallas_call(
        _conv_bn_relu_kernel,
        out_shape=jax.ShapeDtypeStruct((m_pad, n_pad), jnp.float32),
        grid_spec=pltpu.PrefetchScalarGridSpec(
            num_scalar_prefetch=0,
            grid=grid,
            in_specs=[
                pl.BlockSpec((tm, tk), lambda i, j, k: (i, k)),   # patches
                pl.BlockSpec((tk, tn), lambda i, j, k: (k, j)),   # folded W
                pl.BlockSpec((1, tn), lambda i, j, k: (0, j)),    # folded bias
            ],
            out_specs=pl.BlockSpec((tm, tn), lambda i, j, k: (i, j)),
            scratch_shapes=[pltpu.VMEM((tm, tn), jnp.float32)],
        ),
        compiler_params=pltpu.CompilerParams(
            dimension_semantics=("parallel", "parallel", "arbitrary")),
    )(patches, w_packed, b_packed)


# ---------------------------------------------------------------------------
# Wrapper: im2col (channels-last) + fused matmul, PyTorch NCHW interface
# ---------------------------------------------------------------------------
def basic_conv2d_apply(x, w_packed, b_packed, *, kh, kw, stride, padding,
                       cout, K, tk):
    """x: [N, Cin, H, W] float32  ->  [N, Cout, Ho, Wo] float32."""
    n, cin, h, w = x.shape
    # One layout change in, one out (module boundary is NCHW to match torch).
    xh = jnp.transpose(x, (0, 2, 3, 1)).astype(jnp.bfloat16)   # NHWC, bf16
    if padding:
        xh = jnp.pad(xh, ((0, 0), (padding, padding), (padding, padding), (0, 0)))
    hp, wp = h + 2 * padding, w + 2 * padding
    ho = (hp - kh) // stride + 1
    wo = (wp - kw) // stride + 1

    # im2col, tap-major / channel-minor ordering (matches the packed weight).
    # TODO(synk): patches are still materialized in HBM (kh*kw read
    # amplification); an in-kernel tap-accumulation variant would avoid it.
    taps = []
    for i in range(kh):
        for j in range(kw):
            taps.append(lax.slice(
                xh, (0, i, j, 0),
                (n, i + (ho - 1) * stride + 1, j + (wo - 1) * stride + 1, cin),
                (1, stride, stride, 1)))
    patches = jnp.concatenate(taps, axis=-1).reshape(n * ho * wo, kh * kw * cin)

    m = n * ho * wo
    tm = _M_TILE if m >= _M_TILE else _round_up(m, _SUBLANE)
    m_pad = _round_up(m, tm)
    k_pad, n_pad = w_packed.shape
    if m_pad != m or k_pad != K:
        patches = jnp.pad(patches, ((0, m_pad - m), (0, k_pad - K)))

    y = _fused_conv_bn_relu_matmul(patches, w_packed, b_packed,
                                   tm=tm, tn=_LANE, tk=tk)
    y = y[:m, :cout].reshape(n, ho, wo, cout)
    return jnp.transpose(y, (0, 3, 1, 2))                      # back to NCHW


def _fold_bn_into_conv(w, gamma, beta, running_mean, running_var, eps):
    """Fold eval-mode BN affine into the conv weight / bias."""
    cout, cin, kh, kw = w.shape
    scale = gamma / jnp.sqrt(running_var + eps)                # [Cout]
    bias = beta - running_mean * scale                         # [Cout]
    # K ordering (kh, kw, cin) matches the im2col tap-major patch layout.
    wm = jnp.transpose(w, (2, 3, 1, 0)).reshape(kh * kw * cin, cout)
    return wm * scale[None, :], bias


def make_basic_conv2d(params, *, stride=1, padding=0):
    """Build a jitted BasicConv2d forward with pre-packed (folded, bf16,
    lane-padded) weights — all weight layout work happens once, here."""
    w = params["w"]
    cout, cin, kh, kw = w.shape
    wm, bias = _fold_bn_into_conv(w, params["gamma"], params["beta"],
                                  params["mean"], params["var"], params["eps"])
    K = cin * kh * kw
    if K <= _MAX_UNGRIDDED_K:
        tk, k_pad = K, K
    else:
        tk, k_pad = _K_TILE, _round_up(K, _K_TILE)
    n_pad = _round_up(cout, _LANE)                 # lane-dense output stores
    w_packed = jnp.zeros((k_pad, n_pad), jnp.bfloat16)
    w_packed = w_packed.at[:K, :cout].set(wm.astype(jnp.bfloat16))
    b_packed = jnp.zeros((1, n_pad), jnp.float32).at[:, :cout].set(bias[None, :])

    fn = jax.jit(functools.partial(
        basic_conv2d_apply, kh=kh, kw=kw, stride=stride, padding=padding,
        cout=cout, K=K, tk=tk))
    return lambda x: fn(x, w_packed, b_packed)


# ---------------------------------------------------------------------------
# Parameter init + pure-JAX reference (for correctness checking only)
# ---------------------------------------------------------------------------
def init_basic_conv2d_params(key, in_channels, out_channels, kernel_size,
                             eps=1e-3):
    kh = kw = kernel_size
    k_w, k_g, k_b, k_m, k_v = jax.random.split(key, 5)
    fan_in = in_channels * kh * kw
    w = jax.random.normal(k_w, (out_channels, in_channels, kh, kw),
                          jnp.float32) / math.sqrt(fan_in)
    gamma = jax.random.uniform(k_g, (out_channels,), jnp.float32, 0.5, 1.5)
    beta = jax.random.normal(k_b, (out_channels,), jnp.float32) * 0.1
    mean = jax.random.normal(k_m, (out_channels,), jnp.float32) * 0.1
    var = jax.random.uniform(k_v, (out_channels,), jnp.float32, 0.5, 1.5)
    return dict(w=w, gamma=gamma, beta=beta, mean=mean, var=var, eps=eps)


def reference_basic_conv2d(p, x, stride, padding):
    y = lax.conv_general_dilated(
        x, p["w"], window_strides=(stride, stride),
        padding=[(padding, padding), (padding, padding)],
        dimension_numbers=("NCHW", "OIHW", "NCHW"))
    scale = p["gamma"] / jnp.sqrt(p["var"] + p["eps"])
    bias = p["beta"] - p["mean"] * scale
    y = y * scale[None, :, None, None] + bias[None, :, None, None]
    return jnp.maximum(y, 0.0)


def _assert_close(out, ref, atol=1e-1, rtol=5e-2):
    assert bool(jnp.all(jnp.isfinite(out)))
    err = jnp.abs(out - ref)
    tol = atol + rtol * jnp.abs(ref)
    assert bool(jnp.all(err <= tol)), f"max abs err {float(jnp.max(err)):.4f}"


# ---------------------------------------------------------------------------
if __name__ == "__main__":
    key = jax.random.PRNGKey(0)
    k_p1, k_p2, k_x = jax.random.split(key, 3)

    x = jax.random.normal(k_x, (2, 8, 32, 32), jnp.float32)

    # Config 1: BasicConv2d(8, 32, kernel_size=3, stride=1, padding=1)
    p1 = init_basic_conv2d_params(k_p1, 8, 32, 3)
    conv1 = make_basic_conv2d(p1, stride=1, padding=1)
    out1 = jax.block_until_ready(conv1(x))
    assert out1.shape == (2, 32, 32, 32)
    _assert_close(out1, reference_basic_conv2d(p1, x, 1, 1))

    # Config 2: BasicConv2d(8, 48, kernel_size=3, stride=2) (stem-style)
    p2 = init_basic_conv2d_params(k_p2, 8, 48, 3)
    conv2 = make_basic_conv2d(p2, stride=2, padding=0)
    out2 = jax.block_until_ready(conv2(x))
    assert out2.shape == (2, 48, 15, 15)
    _assert_close(out2, reference_basic_conv2d(p2, x, 2, 0))

    print("KERNEL_OK")
</pallas_src>

<mosaic_0001>
module attributes {stable_mosaic.version = 11 : i64} {
  func.func @_conv_bn_relu_kernel(%arg0: i32, %arg1: i32, %arg2: i32, %arg3: memref<512x72xbf16, #tpu.memory_space<vmem>>, %arg4: memref<72x128xbf16, #tpu.memory_space<vmem>>, %arg5: memref<1x128xf32, #tpu.memory_space<vmem>>, %arg6: memref<512x128xf32, #tpu.memory_space<vmem>>, %arg7: memref<512x128xf32, #tpu.memory_space<vmem>>) attributes {dimension_semantics = [#tpu.dimension_semantics<parallel>, #tpu.dimension_semantics<parallel>, #tpu.dimension_semantics<arbitrary>], iteration_bounds = array<i64: 4, 1, 1>, scalar_prefetch = 0 : i64, scratch_operands = 1 : i64, tpu.core_type = #tpu.core_type<tc>, window_params = [{transform_indices = @transform_0, window_bounds = array<i64: 512, 72>}, {transform_indices = @transform_1, window_bounds = array<i64: 72, 128>}, {transform_indices = @transform_2, window_bounds = array<i64: 1, 128>}, {transform_indices = @transform_3, window_bounds = array<i64: 512, 128>}]} {
    %c0_i32 = arith.constant 0 : i32
    %0 = arith.cmpi eq, %arg2, %c0_i32 : i32
    %1 = arith.extui %0 : i1 to i32
    %c0_i32_0 = arith.constant 0 : i32
    %2 = arith.cmpi ne, %1, %c0_i32_0 : i32
    scf.if %2 {
      %cst_10 = arith.constant 0.000000e+00 : f32
      %12 = vector.broadcast %cst_10 : f32 to vector<512x128xf32>
      %c0_11 = arith.constant 0 : index
      %c0_12 = arith.constant 0 : index
      %13 = vector.load %arg7[%c0_11, %c0_12] : memref<512x128xf32, #tpu.memory_space<vmem>>, vector<512x128xf32>
      tpu.vector_store %arg7[%c0_11, %c0_12], %12 {strides = array<i32>} : memref<512x128xf32, #tpu.memory_space<vmem>>, vector<512x128xf32>,
    } else {
    }
    %c0 = arith.constant 0 : index
    %c0_1 = arith.constant 0 : index
    %3 = vector.load %arg7[%c0, %c0_1] : memref<512x128xf32, #tpu.memory_space<vmem>>, vector<512x128xf32>
    %c0_2 = arith.constant 0 : index
    %c0_3 = arith.constant 0 : index
    %4 = vector.load %arg3[%c0_2, %c0_3] : memref<512x72xbf16, #tpu.memory_space<vmem>>, vector<512x72xbf16>
    %c0_4 = arith.constant 0 : index
    %c0_5 = arith.constant 0 : index
    %5 = vector.load %arg4[%c0_4, %c0_5] : memref<72x128xbf16, #tpu.memory_space<vmem>>, vector<72x128xbf16>
    %cst = arith.constant dense<0.000000e+00> : vector<512x128xf32>
    %6 = tpu.matmul %4, %5, %cst {dimension_numbers = #tpu.dot_dimension_numbers<[1], [0], [0], [1], [0, 0, 1, 1], [], []>} : vector<512x72xbf16>, vector<72x128xbf16>, vector<512x128xf32> -> vector<512x128xf32>
    %7 = arith.addf %3, %6 : vector<512x128xf32>
    %c0_6 = arith.constant 0 : index
    %c0_7 = arith.constant 0 : index
    %8 = vector.load %arg7[%c0_6, %c0_7] : memref<512x128xf32, #tpu.memory_space<vmem>>, vector<512x128xf32>
    tpu.vector_store %arg7[%c0_6, %c0_7], %7 {strides = array<i32>} : memref<512x128xf32, #tpu.memory_space<vmem>>, vector<512x128xf32>,
    %c0_i32_8 = arith.constant 0 : i32
    %9 = arith.cmpi eq, %arg2, %c0_i32_8 : i32
    %10 = arith.extui %9 : i1 to i32
    %c0_i32_9 = arith.constant 0 : i32
    %11 = arith.cmpi ne, %10, %c0_i32_9 : i32
    scf.if %11 {
      %c0_10 = arith.constant 0 : index
      %c0_11 = arith.constant 0 : index
      %12 = vector.load %arg7[%c0_10, %c0_11] : memref<512x128xf32, #tpu.memory_space<vmem>>, vector<512x128xf32>
      %c0_12 = arith.constant 0 : index
      %c0_13 = arith.constant 0 : index
      %13 = vector.load %arg5[%c0_12, %c0_13] : memref<1x128xf32, #tpu.memory_space<vmem>>, vector<1x128xf32>
      %14 = vector.broadcast %13 : vector<1x128xf32> to vector<512x128xf32>
      %15 = arith.addf %12, %14 : vector<512x128xf32>
      %cst_14 = arith.constant 0.000000e+00 : f32
      %16 = vector.broadcast %cst_14 : f32 to vector<512x128xf32>
      %17 = arith.maximumf %15, %16 : vector<512x128xf32>
      %c0_15 = arith.constant 0 : index
      %c0_16 = arith.constant 0 : index
      %18 = vector.load %arg6[%c0_15, %c0_16] : memref<512x128xf32, #tpu.memory_space<vmem>>, vector<512x128xf32>
      tpu.vector_store %arg6[%c0_15, %c0_16], %17 {strides = array<i32>} : memref<512x128xf32, #tpu.memory_space<vmem>>, vector<512x128xf32>,
    } else {
    }
    return
  }
  func.func @transform_0(%arg0: i32, %arg1: i32, %arg2: i32) -> (i32, i32) {
    %c0_i32 = arith.constant 0 : i32
    return %arg0, %arg2 : i32, i32
  }
  func.func @transform_1(%arg0: i32, %arg1: i32, %arg2: i32) -> (i32, i32) {
    %c0_i32 = arith.constant 0 : i32
    return %arg2, %arg1 : i32, i32
  }
  func.func @transform_2(%arg0: i32, %arg1: i32, %arg2: i32) -> (i32, i32) {
    %c0_i32 = arith.constant 0 : i32
    %c0_i32_0 = arith.constant 0 : i32
    return %c0_i32, %arg1 : i32, i32
  }
  func.func @transform_3(%arg0: i32, %arg1: i32, %arg2: i32) -> (i32, i32) {
    %c0_i32 = arith.constant 0 : i32
    return %arg0, %arg1 : i32, i32
  }
}

</mosaic_0001>

<llo_original>
// kernel: basic_conv2d_apply.1
$region0: #{basic_conv2d_apply.1}
  #allocation0 [shape = 'u32[]', space=smem, size = 0x4, offset = 0x4, fixed_abs, tag = 'smem constant byte address 0x4 - core index']
  #allocation1 [shape = 'u32[72,128]{1,0:T(1,128)}', space=vmem, size = 0x9000, scoped, tag = 'internal scratch']
  #allocation2 [shape = 'f32[512,128]{1,0:T(8,128)}', space=vmem, size = 0x40000, scoped, tag = 'scratch operand']
  %s0 = inlined_call_operand.vmem [shape: bf16[2048,72], index: 0, kind: input, shape index: {}]
  %s1 = inlined_call_operand.vmem [shape: bf16[72,128], index: 1, kind: input, shape index: {}]
  %s2 = inlined_call_operand.vmem [shape: f32[1,128], index: 2, kind: input, shape index: {}]
  %s3 = inlined_call_operand.vmem [shape: f32[2048,128], index: 3, kind: output, shape index: {}]
  %s4 = sld [smem:[#allocation0]]
  $region53: #{basic_conv2d_apply.1} parent=0
    _
  %s6 = ssub.s32 1, %s4
  %s7 = scalar_select 0, %s6, %s4
  loop: start=0, step=1, limit=6
  $region2: #{basic_conv2d_apply.1} parent=0 // loop_pre_header
    _
  $region3: #{basic_conv2d_apply.1} parent=0 // loop_header
    %s9 = sphi 0, %s13
    %p10 = scmp.ge.s32.totalorder %s9, 6
    %s16 = sphi 0, %s35
    %s17 = sphi 0, %s31
    %s18 = sphi 0, %s27
    %s19 = sphi 0, %s16
    %s20 = sphi 0, %s17
    %s21 = sphi 0, %s18
    %s22 = sphi 0, %s19
    %s23 = sphi 0, %s20
    %s24 = sphi 0, %s21
    %s40 = sphi 0, %s42
    %s43 = sphi 0, %s40
    %s44 = sphi 0, %s43
    %s60 = sphi 0, %s44
    %s68 = sphi 0, %s70
    %s71 = sphi 0, %s68
    %s72 = sphi 0, %s71
    %s88 = sphi 0, %s72
    %s94 = sphi 0, %s96
    %s97 = sphi 0, %s94
    %s98 = sphi 0, %s97
    %s114 = sphi 0, %s98
    %s122 = sphi 0, %s124
    %s125 = sphi 0, %s122
    %s126 = sphi 0, %s125
    %s142 = sphi 0, %s126
  $region4: #{basic_conv2d_apply.1} parent=0 // loop_header_branch
    %12 = sbr.rel (%p10) target = $region8
  $region5: #{basic_conv2d_apply.1} parent=0 // loop_body
    %s14 = ssub.s32 %s9, 1
    %s15 = ssub.s32 %s9, 2
    %s25 = sadd.s32 1, %s18
    %p26 = scmp.ge.s32.totalorder %s25, 1
    %s27 = scalar_select %p26, 0, %s25
    %s28 = sadd.s32 1, %s17
    %s29 = scalar_select %p26, %s28, %s17
    %p30 = scmp.ge.s32.totalorder %s29, 1
    %s31 = scalar_select %p30, 0, %s29
    %s32 = sadd.s32 1, %s16
    %s33 = scalar_select %p30, %s32, %s16
    %p34 = scmp.ge.s32.totalorder %s33, 4
    %s35 = scalar_select %p34, 0, %s33
    %s36 = ssub.s32 %s16, %s35
    %s37 = ssub.s32 %s18, %s27
    %s38 = sor.u32 %s36, %s37
    %p39 = scmp.eq.s32.totalorder %s38, 0
    %s41 = sadd.s32 %s40, 1
    %s42 = scalar_select %p39, %s40, %s41
    %p45 = pneg %p39
    %p46 = scmp.eq.s32.totalorder %s9, 3
    %p47 = por %p45, %p46
    %p48 = scmp.ne.s32.totalorder %s40, %s43
    %p49 = scmp.eq.s32.totalorder %s9, 0
    %p50 = por %p48, %p49
    %p51 = scmp.ne.s32.totalorder %s40, %s43
    %p52 = scmp.eq.s32.totalorder %s14, 3
    %p53 = por %p51, %p52
    %p54 = scmp.ne.s32.totalorder %s43, %s44
    %p55 = scmp.eq.s32.totalorder %s14, 0
    %p56 = por %p54, %p55
    %p57 = scmp.ne.s32.totalorder %s43, %s44
    %p58 = scmp.eq.s32.totalorder %s15, 3
    %p59 = por %p57, %p58
    %p61 = scmp.ne.s32.totalorder %s44, %s60
    %p62 = scmp.eq.s32.totalorder %s15, 0
    %p63 = por %p61, %p62
    %s64 = ssub.s32 %s18, %s27
    %s65 = ssub.s32 %s17, %s31
    %s66 = sor.u32 %s64, %s65
    %p67 = scmp.eq.s32.totalorder %s66, 0
    %s69 = sadd.s32 %s68, 1
    %s70 = scalar_select %p67, %s68, %s69
    %p73 = pneg %p67
    %p74 = scmp.eq.s32.totalorder %s9, 3
    %p75 = por %p73, %p74
    %p76 = scmp.ne.s32.totalorder %s68, %s71
    %p77 = scmp.eq.s32.totalorder %s9, 0
    %p78 = por %p76, %p77
    %p79 = scmp.ne.s32.totalorder %s68, %s71
    %p80 = scmp.eq.s32.totalorder %s14, 3
    %p81 = por %p79, %p80
    %p82 = scmp.ne.s32.totalorder %s71, %s72
    %p83 = scmp.eq.s32.totalorder %s14, 0
    %p84 = por %p82, %p83
    %p85 = scmp.ne.s32.totalorder %s71, %s72
    %p86 = scmp.eq.s32.totalorder %s15, 3
    %p87 = por %p85, %p86
    %p89 = scmp.ne.s32.totalorder %s72, %s88
    %p90 = scmp.eq.s32.totalorder %s15, 0
    %p91 = por %p89, %p90
    %s92 = ssub.s32 %s17, %s31
    %p93 = scmp.eq.s32.totalorder %s92, 0
    %s95 = sadd.s32 %s94, 1
    %s96 = scalar_select %p93, %s94, %s95
    %p99 = pneg %p93
    %p100 = scmp.eq.s32.totalorder %s9, 3
    %p101 = por %p99, %p100
    %p102 = scmp.ne.s32.totalorder %s94, %s97
    %p103 = scmp.eq.s32.totalorder %s9, 0
    %p104 = por %p102, %p103
    %p105 = scmp.ne.s32.totalorder %s94, %s97
    %p106 = scmp.eq.s32.totalorder %s14, 3
    %p107 = por %p105, %p106
    %p108 = scmp.ne.s32.totalorder %s97, %s98
    %p109 = scmp.eq.s32.totalorder %s14, 0
    %p110 = por %p108, %p109
    %p111 = scmp.ne.s32.totalorder %s97, %s98
    %p112 = scmp.eq.s32.totalorder %s15, 3
    %p113 = por %p111, %p112
    %p115 = scmp.ne.s32.totalorder %s98, %s114
    %p116 = scmp.eq.s32.totalorder %s15, 0
    %p117 = por %p115, %p116
    %s118 = ssub.s32 %s16, %s35
    %s119 = ssub.s32 %s17, %s31
    %s120 = sor.u32 %s118, %s119
    %p121 = scmp.eq.s32.totalorder %s120, 0
    %s123 = sadd.s32 %s122, 1
    %s124 = scalar_select %p121, %s122, %s123
    %p127 = pneg %p121
    %p128 = scmp.eq.s32.totalorder %s9, 3
    %p129 = por %p127, %p128
    %p130 = scmp.ne.s32.totalorder %s122, %s125
    %p131 = scmp.eq.s32.totalorder %s9, 0
    %p132 = por %p130, %p131
    %p133 = scmp.ne.s32.totalorder %s122, %s125
    %p134 = scmp.eq.s32.totalorder %s14, 3
    %p135 = por %p133, %p134
    %p136 = scmp.ne.s32.totalorder %s125, %s126
    %p137 = scmp.eq.s32.totalorder %s14, 0
    %p138 = por %p136, %p137
    %p139 = scmp.ne.s32.totalorder %s125, %s126
    %p140 = scmp.eq.s32.totalorder %s15, 3
    %p141 = por %p139, %p140
    %p143 = scmp.ne.s32.totalorder %s126, %s142
    %p144 = scmp.eq.s32.totalorder %s15, 0
    %p145 = por %p143, %p144
    %p146 = scmp.le.s32.totalorder 1, %s9
    %p147 = scmp.lt.s32.totalorder %s9, 5
    %p148 = pnand %p146, %p147
    %p149 = pneg %p148
    // Predicated region
    $region9: #{basic_conv2d_apply.1} parent=5 // pred_check
      _
    $region10: #{basic_conv2d_apply.1} parent=5 // pred_check_branch
      %151 = sbr.rel (%p148) target = $region12
    $region11: #{basic_conv2d_apply.1} parent=5 // pred_region
      %s152 = ssub.s32 %s9, 1
      // Predicated region
      $region13: #{basic_conv2d_apply.1} parent=11 // pred_check
        %p153 = pneg %p84
      $region14: #{basic_conv2d_apply.1} parent=11 // pred_check_branch
        %155 = sbr.rel (%p153) target = $region16
      $region15: #{basic_conv2d_apply.1} parent=11 // pred_region
        %s156 = smul.u32 9, %s21
        %p157 = scmp.lt.s32.totalorder %s156, 8
        %s158 = scalar_select %p157, %s156, 8
        %p159 = scmp.lt.s32.totalorder %s20, 0
        %s160 = scalar_select %p159, %s20, 0
        %s161 = sadd.s32 %s160, %s158
        %s162 = smul.addr %s161, 4
        %s163 = scalar_lea.vmem %s1, %s162
        %s164 = smul.u32 9, %s21
      $region16: #{basic_conv2d_apply.1} parent=11 // pred_fallthru
        _
      // Predicated region
      $region17: #{basic_conv2d_apply.1} parent=11 // pred_check
        %p165 = pneg %p110
      $region18: #{basic_conv2d_apply.1} parent=11 // pred_check_branch
        %167 = sbr.rel (%p165) target = $region20
      $region19: #{basic_conv2d_apply.1} parent=11 // pred_region
        %p168 = scmp.lt.s32.totalorder %s20, 0
        %s169 = scalar_select %p168, %s20, 0
        %s170 = scalar_lea.vmem %s2, %s169
      $region20: #{basic_conv2d_apply.1} parent=11 // pred_fallthru
        _
    $region12: #{basic_conv2d_apply.1} parent=5 // pred_fallthru
      _
    %p171 = scmp.lt.s32.totalorder %s9, 4
    // Predicated region
    $region21: #{basic_conv2d_apply.1} parent=5 // pred_check
      %p172 = pneg %p171
    $region22: #{basic_conv2d_apply.1} parent=5 // pred_check_branch
      %174 = sbr.rel (%p172) target = $region24
    $region23: #{basic_conv2d_apply.1} parent=5 // pred_region
      // Predicated region
      $region25: #{basic_conv2d_apply.1} parent=23 // pred_check
        %p175 = pneg %p50
      $region26: #{basic_conv2d_apply.1} parent=23 // pred_check_branch
        %177 = sbr.rel (%p175) target = $region28
      $region27: #{basic_conv2d_apply.1} parent=23 // pred_region
        %s178 = smul.u32 64, %s16
        %p179 = scmp.lt.s32.totalorder %s178, 255
        %s180 = scalar_select %p179, %s178, 255
        %p181 = scmp.lt.s32.totalorder %s18, 0
        %s182 = scalar_select %p181, %s18, 0
        %s183 = sadd.s32 %s182, %s180
        %s184 = smul.addr %s183, 4
        %s185 = scalar_lea.vmem %s0, %s184
        %s186 = smul.u32 64, %s16
      $region28: #{basic_conv2d_apply.1} parent=23 // pred_fallthru
        _
    $region24: #{basic_conv2d_apply.1} parent=5 // pred_fallthru
      _
    %p187 = scmp.le.s32.totalorder 1, %s9
    %p188 = scmp.lt.s32.totalorder %s9, 5
    %p189 = pnand %p187, %p188
    %p190 = pneg %p189
    // Predicated region
    $region29: #{basic_conv2d_apply.1} parent=5 // pred_check
      _
    $region30: #{basic_conv2d_apply.1} parent=5 // pred_check_branch
      %192 = sbr.rel (%p189) target = $region32
    $region31: #{basic_conv2d_apply.1} parent=5 // pred_region
      %s193 = ssub.s32 %s9, 1
      %s194 = smul.u32 64, %s19
      %p195 = scmp.lt.s32.totalorder %s194, 255
      %s196 = scalar_select %p195, %s194, 255
      %p197 = scmp.lt.s32.totalorder %s21, 0
      %s198 = scalar_select %p197, %s21, 0
      %s199 = sadd.s32 %s198, %s196
      %s200 = smul.addr %s199, 4
      %s201 = scalar_lea.vmem %s0, %s200
      %p202 = pneg %p56
      %p203 = pneg %p53
      %s204 = smul.u32 9, %s21
      %p205 = scmp.lt.s32.totalorder %s204, 8
      %s206 = scalar_select %p205, %s204, 8
      %p207 = scmp.lt.s32.totalorder %s20, 0
      %s208 = scalar_select %p207, %s20, 0
      %s209 = sadd.s32 %s208, %s206
      %s210 = smul.addr %s209, 4
      %s211 = scalar_lea.vmem %s1, %s210
      %p212 = pneg %p84
      %p213 = pneg %p81
      %p214 = scmp.lt.s32.totalorder %s20, 0
      %s215 = scalar_select %p214, %s20, 0
      %s216 = scalar_lea.vmem %s2, %s215
      %p217 = pneg %p110
      %p218 = pneg %p107
      %p219 = pneg %p138
      %p220 = pneg %p135
      %s221 = smul.u32 64, %s19
      %p222 = scmp.lt.s32.totalorder %s221, 255
      %s223 = scalar_select %p222, %s221, 255
      %p224 = scmp.lt.s32.totalorder %s20, 0
      %s225 = scalar_select %p224, %s20, 0
      %s226 = sadd.s32 %s225, %s223
      %s227 = smul.addr %s226, 8
      %s228 = scalar_lea.vmem %s3, %s227
      %s229 = smul.u32 64, %s19
      %p230 = scmp.lt.s32.totalorder %s229, 255
      %s231 = scalar_select %p230, %s229, 255
      %p232 = scmp.lt.s32.totalorder %s21, 0
      %s233 = scalar_select %p232, %s21, 0
      %s234 = sadd.s32 %s233, %s231
      %s235 = smul.addr %s234, 4
      %s236 = scalar_lea.vmem %s0, %s235
      %s237 = smul.u32 64, %s19
      %s238 = smul.u32 9, %s21
      %p239 = scmp.lt.s32.totalorder %s238, 8
      %s240 = scalar_select %p239, %s238, 8
      %p241 = scmp.lt.s32.totalorder %s20, 0
      %s242 = scalar_select %p241, %s20, 0
      %s243 = sadd.s32 %s242, %s240
      %s244 = smul.addr %s243, 4
      %s245 = scalar_lea.vmem %s1, %s244
      %s246 = smul.u32 9, %s21
      %p247 = scmp.lt.s32.totalorder %s20, 0
      %s248 = scalar_select %p247, %s20, 0
      %s249 = scalar_lea.vmem %s2, %s248
      %s250 = smul.u32 64, %s19
      %p251 = scmp.lt.s32.totalorder %s250, 255
      %s252 = scalar_select %p251, %s250, 255
      %p253 = scmp.lt.s32.totalorder %s20, 0
      %s254 = scalar_select %p253, %s20, 0
      %s255 = sadd.s32 %s254, %s252
      %s256 = smul.addr %s255, 8
      %s257 = scalar_lea.vmem %s3, %s256
      %s258 = smul.u32 64, %s19
      %p260 = scmp.eq.s32.totalorder %s21, 0
      // Predicated region
      $region33: #{basic_conv2d_apply.1} parent=31 // pred_check
        %p261 = pneg %p260
      $region34: #{basic_conv2d_apply.1} parent=31 // pred_check_branch
        %263 = sbr.rel (%p261) target = $region36
      $region35: #{basic_conv2d_apply.1} parent=31 // pred_region
        %264 = vst [vmem:[#allocation2] sm:$0xff] 0.0
        %265 = vst [vmem:[#allocation2 + $0x8] sm:$0xff] 0.0
        %266 = vst [vmem:[#allocation2 + $0x10] sm:$0xff] 0.0
        %267 = vst [vmem:[#allocation2 + $0x18] sm:$0xff] 0.0
        %268 = vst [vmem:[#allocation2 + $0x20] sm:$0xff] 0.0
        %269 = vst [vmem:[#allocation2 + $0x28] sm:$0xff] 0.0
        %270 = vst [vmem:[#allocation2 + $0x30] sm:$0xff] 0.0
        %271 = vst [vmem:[#allocation2 + $0x38] sm:$0xff] 0.0
        %272 = vst [vmem:[#allocation2 + $0x40] sm:$0xff] 0.0
        %273 = vst [vmem:[#allocation2 + $0x48] sm:$0xff] 0.0
        %274 = vst [vmem:[#allocation2 + $0x50] sm:$0xff] 0.0
        %275 = vst [vmem:[#allocation2 + $0x58] sm:$0xff] 0.0
        %276 = vst [vmem:[#allocation2 + $0x60] sm:$0xff] 0.0
        %277 = vst [vmem:[#allocation2 + $0x68] sm:$0xff] 0.0
        %278 = vst [vmem:[#allocation2 + $0x70] sm:$0xff] 0.0
        %279 = vst [vmem:[#allocation2 + $0x78] sm:$0xff] 0.0
        %280 = vst [vmem:[#allocation2 + $0x80] sm:$0xff] 0.0
        %281 = vst [vmem:[#allocation2 + $0x88] sm:$0xff] 0.0
        %282 = vst [vmem:[#allocation2 + $0x90] sm:$0xff] 0.0
        %283 = vst [vmem:[#allocation2 + $0x98] sm:$0xff] 0.0
        %284 = vst [vmem:[#allocation2 + $0xa0] sm:$0xff] 0.0
        %285 = vst [vmem:[#allocation2 + $0xa8] sm:$0xff] 0.0
        %286 = vst [vmem:[#allocation2 + $0xb0] sm:$0xff] 0.0
        %287 = vst [vmem:[#allocation2 + $0xb8] sm:$0xff] 0.0
        %288 = vst [vmem:[#allocation2 + $0xc0] sm:$0xff] 0.0
        %289 = vst [vmem:[#allocation2 + $0xc8] sm:$0xff] 0.0
        %290 = vst [vmem:[#allocation2 + $0xd0] sm:$0xff] 0.0
        %291 = vst [vmem:[#allocation2 + $0xd8] sm:$0xff] 0.0
        %292 = vst [vmem:[#allocation2 + $0xe0] sm:$0xff] 0.0
        %293 = vst [vmem:[#allocation2 + $0xe8] sm:$0xff] 0.0
        %294 = vst [vmem:[#allocation2 + $0xf0] sm:$0xff] 0.0
        %295 = vst [vmem:[#allocation2 + $0xf8] sm:$0xff] 0.0
        %296 = vst [vmem:[#allocation2 + $0x100] sm:$0xff] 0.0
        %297 = vst [vmem:[#allocation2 + $0x108] sm:$0xff] 0.0
        %298 = vst [vmem:[#allocation2 + $0x110] sm:$0xff] 0.0
        %299 = vst [vmem:[#allocation2 + $0x118] sm:$0xff] 0.0
        %300 = vst [vmem:[#allocation2 + $0x120] sm:$0xff] 0.0
        %301 = vst [vmem:[#allocation2 + $0x128] sm:$0xff] 0.0
        %302 = vst [vmem:[#allocation2 + $0x130] sm:$0xff] 0.0
        %303 = vst [vmem:[#allocation2 + $0x138] sm:$0xff] 0.0
        %304 = vst [vmem:[#allocation2 + $0x140] sm:$0xff] 0.0
        %305 = vst [vmem:[#allocation2 + $0x148] sm:$0xff] 0.0
        %306 = vst [vmem:[#allocation2 + $0x150] sm:$0xff] 0.0
        %307 = vst [vmem:[#allocation2 + $0x158] sm:$0xff] 0.0
        %308 = vst [vmem:[#allocation2 + $0x160] sm:$0xff] 0.0
        %309 = vst [vmem:[#allocation2 + $0x168] sm:$0xff] 0.0
        %310 = vst [vmem:[#allocation2 + $0x170] sm:$0xff] 0.0
        %311 = vst [vmem:[#allocation2 + $0x178] sm:$0xff] 0.0
        %312 = vst [vmem:[#allocation2 + $0x180] sm:$0xff] 0.0
        %313 = vst [vmem:[#allocation2 + $0x188] sm:$0xff] 0.0
        %314 = vst [vmem:[#allocation2 + $0x190] sm:$0xff] 0.0
        %315 = vst [vmem:[#allocation2 + $0x198] sm:$0xff] 0.0
        %316 = vst [vmem:[#allocation2 + $0x1a0] sm:$0xff] 0.0
        %317 = vst [vmem:[#allocation2 + $0x1a8] sm:$0xff] 0.0
        %318 = vst [vmem:[#allocation2 + $0x1b0] sm:$0xff] 0.0
        %319 = vst [vmem:[#allocation2 + $0x1b8] sm:$0xff] 0.0
        %320 = vst [vmem:[#allocation2 + $0x1c0] sm:$0xff] 0.0
        %321 = vst [vmem:[#allocation2 + $0x1c8] sm:$0xff] 0.0
        %322 = vst [vmem:[#allocation2 + $0x1d0] sm:$0xff] 0.0
        %323 = vst [vmem:[#allocation2 + $0x1d8] sm:$0xff] 0.0
        %324 = vst [vmem:[#allocation2 + $0x1e0] sm:$0xff] 0.0
        %325 = vst [vmem:[#allocation2 + $0x1e8] sm:$0xff] 0.0
        %326 = vst [vmem:[#allocation2 + $0x1f0] sm:$0xff] 0.0
        %327 = vst [vmem:[#allocation2 + $0x1f8] sm:$0xff] 0.0
      $region36: #{basic_conv2d_apply.1} parent=31 // pred_fallthru
        _
      %v328 = vld [vmem:[#allocation2] sm:$0xff]
      %v329 = vld [vmem:[#allocation2 + $0x8] sm:$0xff]
      %v330 = vld [vmem:[#allocation2 + $0x10] sm:$0xff]
      %v331 = vld [vmem:[#allocation2 + $0x18] sm:$0xff]
      %v332 = vld [vmem:[#allocation2 + $0x20] sm:$0xff]
      %v333 = vld [vmem:[#allocation2 + $0x28] sm:$0xff]
      %v334 = vld [vmem:[#allocation2 + $0x30] sm:$0xff]
      %v335 = vld [vmem:[#allocation2 + $0x38] sm:$0xff]
      %v336 = vld [vmem:[#allocation2 + $0x40] sm:$0xff]
      %v337 = vld [vmem:[#allocation2 + $0x48] sm:$0xff]
      %v338 = vld [vmem:[#allocation2 + $0x50] sm:$0xff]
      %v339 = vld [vmem:[#allocation2 + $0x58] sm:$0xff]
      %v340 = vld [vmem:[#allocation2 + $0x60] sm:$0xff]
      %v341 = vld [vmem:[#allocation2 + $0x68] sm:$0xff]
      %v342 = vld [vmem:[#allocation2 + $0x70] sm:$0xff]
      %v343 = vld [vmem:[#allocation2 + $0x78] sm:$0xff]
      %v344 = vld [vmem:[#allocation2 + $0x80] sm:$0xff]
      %v345 = vld [vmem:[#allocation2 + $0x88] sm:$0xff]
      %v346 = vld [vmem:[#allocation2 + $0x90] sm:$0xff]
      %v347 = vld [vmem:[#allocation2 + $0x98] sm:$0xff]
      %v348 = vld [vmem:[#allocation2 + $0xa0] sm:$0xff]
      %v349 = vld [vmem:[#allocation2 + $0xa8] sm:$0xff]
      %v350 = vld [vmem:[#allocation2 + $0xb0] sm:$0xff]
      %v351 = vld [vmem:[#allocation2 + $0xb8] sm:$0xff]
      %v352 = vld [vmem:[#allocation2 + $0xc0] sm:$0xff]
      %v353 = vld [vmem:[#allocation2 + $0xc8] sm:$0xff]
      %v354 = vld [vmem:[#allocation2 + $0xd0] sm:$0xff]
      %v355 = vld [vmem:[#allocation2 + $0xd8] sm:$0xff]
      %v356 = vld [vmem:[#allocation2 + $0xe0] sm:$0xff]
      %v357 = vld [vmem:[#allocation2 + $0xe8] sm:$0xff]
      %v358 = vld [vmem:[#allocation2 + $0xf0] sm:$0xff]
      %v359 = vld [vmem:[#allocation2 + $0xf8] sm:$0xff]
      %v360 = vld [vmem:[#allocation2 + $0x100] sm:$0xff]
      %v361 = vld [vmem:[#allocation2 + $0x108] sm:$0xff]
      %v362 = vld [vmem:[#allocation2 + $0x110] sm:$0xff]
      %v363 = vld [vmem:[#allocation2 + $0x118] sm:$0xff]
      %v364 = vld [vmem:[#allocation2 + $0x120] sm:$0xff]
      %v365 = vld [vmem:[#allocation2 + $0x128] sm:$0xff]
      %v366 = vld [vmem:[#allocation2 + $0x130] sm:$0xff]
      %v367 = vld [vmem:[#allocation2 + $0x138] sm:$0xff]
      %v368 = vld [vmem:[#allocation2 + $0x140] sm:$0xff]
      %v369 = vld [vmem:[#allocation2 + $0x148] sm:$0xff]
      %v370 = vld [vmem:[#allocation2 + $0x150] sm:$0xff]
      %v371 = vld [vmem:[#allocation2 + $0x158] sm:$0xff]
      %v372 = vld [vmem:[#allocation2 + $0x160] sm:$0xff]
      %v373 = vld [vmem:[#allocation2 + $0x168] sm:$0xff]
      %v374 = vld [vmem:[#allocation2 + $0x170] sm:$0xff]
      %v375 = vld [vmem:[#allocation2 + $0x178] sm:$0xff]
      %v376 = vld [vmem:[#allocation2 + $0x180] sm:$0xff]
      %v377 = vld [vmem:[#allocation2 + $0x188] sm:$0xff]
      %v378 = vld [vmem:[#allocation2 + $0x190] sm:$0xff]
      %v379 = vld [vmem:[#allocation2 + $0x198] sm:$0xff]
      %v380 = vld [vmem:[#allocation2 + $0x1a0] sm:$0xff]
      %v381 = vld [vmem:[#allocation2 + $0x1a8] sm:$0xff]
      %v382 = vld [vmem:[#allocation2 + $0x1b0] sm:$0xff]
      %v383 = vld [vmem:[#allocation2 + $0x1b8] sm:$0xff]
      %v384 = vld [vmem:[#allocation2 + $0x1c0] sm:$0xff]
      %v385 = vld [vmem:[#allocation2 + $0x1c8] sm:$0xff]
      %v386 = vld [vmem:[#allocation2 + $0x1d0] sm:$0xff]
      %v387 = vld [vmem:[#allocation2 + $0x1d8] sm:$0xff]
      %v388 = vld [vmem:[#allocation2 + $0x1e0] sm:$0xff]
      %v389 = vld [vmem:[#allocation2 + $0x1e8] sm:$0xff]
      %v390 = vld [vmem:[#allocation2 + $0x1f0] sm:$0xff]
      %v391 = vld [vmem:[#allocation2 + $0x1f8] sm:$0xff]
      %v392 = vld [vmem:[%s236] sm:$0xf]
      %v393 = vld [vmem:[%s236 + $0x4] sm:$0xf]
      %v394 = vld [vmem:[%s236 + $0x8] sm:$0xf]
      %v395 = vld [vmem:[%s236 + $0xc] sm:$0xf]
      %v396 = vld [vmem:[%s236 + $0x10] sm:$0xf]
      %v397 = vld [vmem:[%s236 + $0x14] sm:$0xf]
      %v398 = vld [vmem:[%s236 + $0x18] sm:$0xf]
      %v399 = vld [vmem:[%s236 + $0x1c] sm:$0xf]
      %v400 = vld [vmem:[%s236 + $0x20] sm:$0xf]
      %v401 = vld [vmem:[%s236 + $0x24] sm:$0xf]
      %v402 = vld [vmem:[%s236 + $0x28] sm:$0xf]
      %v403 = vld [vmem:[%s236 + $0x2c] sm:$0xf]
      %v404 = vld [vmem:[%s236 + $0x30] sm:$0xf]
      %v405 = vld [vmem:[%s236 + $0x34] sm:$0xf]
      %v406 = vld [vmem:[%s236 + $0x38] sm:$0xf]
      %v407 = vld [vmem:[%s236 + $0x3c] sm:$0xf]
      %v408 = vld [vmem:[%s236 + $0x40] sm:$0xf]
      %v409 = vld [vmem:[%s236 + $0x44] sm:$0xf]
      %v410 = vld [vmem:[%s236 + $0x48] sm:$0xf]
      %v411 = vld [vmem:[%s236 + $0x4c] sm:$0xf]
      %v412 = vld [vmem:[%s236 + $0x50] sm:$0xf]
      %v413 = vld [vmem:[%s236 + $0x54] sm:$0xf]
      %v414 = vld [vmem:[%s236 + $0x58] sm:$0xf]
      %v415 = vld [vmem:[%s236 + $0x5c] sm:$0xf]
      %v416 = vld [vmem:[%s236 + $0x60] sm:$0xf]
      %v417 = vld [vmem:[%s236 + $0x64] sm:$0xf]
      %v418 = vld [vmem:[%s236 + $0x68] sm:$0xf]
      %v419 = vld [vmem:[%s236 + $0x6c] sm:$0xf]
      %v420 = vld [vmem:[%s236 + $0x70] sm:$0xf]
      %v421 = vld [vmem:[%s236 + $0x74] sm:$0xf]
      %v422 = vld [vmem:[%s236 + $0x78] sm:$0xf]
      %v423 = vld [vmem:[%s236 + $0x7c] sm:$0xf]
      %v424 = vld [vmem:[%s236 + $0x80] sm:$0xf]
      %v425 = vld [vmem:[%s236 + $0x84] sm:$0xf]
      %v426 = vld [vmem:[%s236 + $0x88] sm:$0xf]
      %v427 = vld [vmem:[%s236 + $0x8c] sm:$0xf]
      %v428 = vld [vmem:[%s236 + $0x90] sm:$0xf]
      %v429 = vld [vmem:[%s236 + $0x94] sm:$0xf]
      %v430 = vld [vmem:[%s236 + $0x98] sm:$0xf]
      %v431 = vld [vmem:[%s236 + $0x9c] sm:$0xf]
      %v432 = vld [vmem:[%s236 + $0xa0] sm:$0xf]
      %v433 = vld [vmem:[%s236 + $0xa4] sm:$0xf]
      %v434 = vld [vmem:[%s236 + $0xa8] sm:$0xf]
      %v435 = vld [vmem:[%s236 + $0xac] sm:$0xf]
      %v436 = vld [vmem:[%s236 + $0xb0] sm:$0xf]
      %v437 = vld [vmem:[%s236 + $0xb4] sm:$0xf]
      %v438 = vld [vmem:[%s236 + $0xb8] sm:$0xf]
      %v439 = vld [vmem:[%s236 + $0xbc] sm:$0xf]
      %v440 = vld [vmem:[%s236 + $0xc0] sm:$0xf]
      %v441 = vld [vmem:[%s236 + $0xc4] sm:$0xf]
      %v442 = vld [vmem:[%s236 + $0xc8] sm:$0xf]
      %v443 = vld [vmem:[%s236 + $0xcc] sm:$0xf]
      %v444 = vld [vmem:[%s236 + $0xd0] sm:$0xf]
      %v445 = vld [vmem:[%s236 + $0xd4] sm:$0xf]
      %v446 = vld [vmem:[%s236 + $0xd8] sm:$0xf]
      %v447 = vld [vmem:[%s236 + $0xdc] sm:$0xf]
      %v448 = vld [vmem:[%s236 + $0xe0] sm:$0xf]
      %v449 = vld [vmem:[%s236 + $0xe4] sm:$0xf]
      %v450 = vld [vmem:[%s236 + $0xe8] sm:$0xf]
      %v451 = vld [vmem:[%s236 + $0xec] sm:$0xf]
      %v452 = vld [vmem:[%s236 + $0xf0] sm:$0xf]
      %v453 = vld [vmem:[%s236 + $0xf4] sm:$0xf]
      %v454 = vld [vmem:[%s236 + $0xf8] sm:$0xf]
      %v455 = vld [vmem:[%s236 + $0xfc] sm:$0xf]
      %v456 = vld [vmem:[%s245] sm:$0xf]
      %v457 = vld [vmem:[%s245 + $0x4] sm:$0xf]
      %v458 = vld [vmem:[%s245 + $0x8] sm:$0xf]
      %v459 = vld [vmem:[%s245 + $0xc] sm:$0xf]
      %v460 = vld [vmem:[%s245 + $0x10] sm:$0xf]
      %v461 = vld [vmem:[%s245 + $0x14] sm:$0xf]
      %v462 = vld [vmem:[%s245 + $0x18] sm:$0xf]
      %v463 = vld [vmem:[%s245 + $0x1c] sm:$0xf]
      %v464 = vld [vmem:[%s245 + $0x20] sm:$0xf]
      %v529 = vunpack.c.l.b16 %v392
      %v530 = vunpack.c.l.b16 %v393
      %v531 = vunpack.c.l.b16 %v394
      %v532 = vunpack.c.l.b16 %v395
      %v533 = vunpack.c.l.b16 %v396
      %v534 = vunpack.c.l.b16 %v397
      %v535 = vunpack.c.l.b16 %v398
      %v536 = vunpack.c.l.b16 %v399
      %v537 = vunpack.c.l.b16 %v400
      %v538 = vunpack.c.l.b16 %v401
      %v539 = vunpack.c.l.b16 %v402
      %v540 = vunpack.c.l.b16 %v403
      %v541 = vunpack.c.l.b16 %v404
      %v542 = vunpack.c.l.b16 %v405
      %v543 = vunpack.c.l.b16 %v406
      %v544 = vunpack.c.l.b16 %v407
      %v545 = vunpack.c.l.b16 %v408
      %v546 = vunpack.c.l.b16 %v409
      %v547 = vunpack.c.l.b16 %v410
      %v548 = vunpack.c.l.b16 %v411
      %v549 = vunpack.c.l.b16 %v412
      %v550 = vunpack.c.l.b16 %v413
      %v551 = vunpack.c.l.b16 %v414
      %v552 = vunpack.c.l.b16 %v415
      %v553 = vunpack.c.l.b16 %v416
      %v554 = vunpack.c.l.b16 %v417
      %v555 = vunpack.c.l.b16 %v418
      %v556 = vunpack.c.l.b16 %v419
      %v557 = vunpack.c.l.b16 %v420
      %v558 = vunpack.c.l.b16 %v421
      %v559 = vunpack.c.l.b16 %v422
      %v560 = vunpack.c.l.b16 %v423
      %v561 = vunpack.c.l.b16 %v424
      %v562 = vunpack.c.l.b16 %v425
      %v563 = vunpack.c.l.b16 %v426
      %v564 = vunpack.c.l.b16 %v427
      %v565 = vunpack.c.l.b16 %v428
      %v566 = vunpack.c.l.b16 %v429
      %v567 = vunpack.c.l.b16 %v430
      %v568 = vunpack.c.l.b16 %v431
      %v569 = vunpack.c.l.b16 %v432
      %v570 = vunpack.c.l.b16 %v433
      %v571 = vunpack.c.l.b16 %v434
      %v572 = vunpack.c.l.b16 %v435
      %v573 = vunpack.c.l.b16 %v436
      %v574 = vunpack.c.l.b16 %v437
      %v575 = vunpack.c.l.b16 %v438
      %v576 = vunpack.c.l.b16 %v439
      %v577 = vunpack.c.l.b16 %v440
      %v578 = vunpack.c.l.b16 %v441
      %v579 = vunpack.c.l.b16 %v442
      %v580 = vunpack.c.l.b16 %v443
      %v581 = vunpack.c.l.b16 %v444
      %v582 = vunpack.c.l.b16 %v445
      %v583 = vunpack.c.l.b16 %v446
      %v584 = vunpack.c.l.b16 %v447
      %v585 = vunpack.c.l.b16 %v448
      %v586 = vunpack.c.l.b16 %v449
      %v587 = vunpack.c.l.b16 %v450
      %v588 = vunpack.c.l.b16 %v451
      %v589 = vunpack.c.l.b16 %v452
      %v590 = vunpack.c.l.b16 %v453
      %v591 = vunpack.c.l.b16 %v454
      %v592 = vunpack.c.l.b16 %v455
      %v593 = vpack.c.b16 %v530, %v529
      %v594 = vpack.c.b16 %v532, %v531
      %v595 = vpack.c.b16 %v534, %v533
      %v596 = vpack.c.b16 %v536, %v535
      %v597 = vpack.c.b16 %v538, %v537
      %v598 = vpack.c.b16 %v540, %v539
      %v599 = vpack.c.b16 %v542, %v541
      %v600 = vpack.c.b16 %v544, %v543
      %v601 = vpack.c.b16 %v546, %v545
      %v602 = vpack.c.b16 %v548, %v547
      %v603 = vpack.c.b16 %v550, %v549
      %v604 = vpack.c.b16 %v552, %v551
      %v605 = vpack.c.b16 %v554, %v553
      %v606 = vpack.c.b16 %v556, %v555
      %v607 = vpack.c.b16 %v558, %v557
      %v608 = vpack.c.b16 %v560, %v559
      %v609 = vpack.c.b16 %v562, %v561
      %v610 = vpack.c.b16 %v564, %v563
      %v611 = vpack.c.b16 %v566, %v565
      %v612 = vpack.c.b16 %v568, %v567
      %v613 = vpack.c.b16 %v570, %v569
      %v614 = vpack.c.b16 %v572, %v571
      %v615 = vpack.c.b16 %v574, %v573
      %v616 = vpack.c.b16 %v576, %v575
      %v617 = vpack.c.b16 %v578, %v577
      %v618 = vpack.c.b16 %v580, %v579
      %v619 = vpack.c.b16 %v582, %v581
      %v620 = vpack.c.b16 %v584, %v583
      %v621 = vpack.c.b16 %v586, %v585
      %v622 = vpack.c.b16 %v588, %v587
      %v623 = vpack.c.b16 %v590, %v589
      %v624 = vpack.c.b16 %v592, %v591
      %v634 = vunpack.c.l.b16 %v456
      %v635 = vunpack.c.l.b16 %v457
      %v636 = vunpack.c.l.b16 %v458
      %v637 = vunpack.c.l.b16 %v459
      %v638 = vunpack.c.l.b16 %v460
      %v639 = vunpack.c.l.b16 %v461
      %v640 = vunpack.c.l.b16 %v462
      %v641 = vunpack.c.l.b16 %v463
      %v642 = vunpack.c.l.b16 %v464
      %v643 = vpack.c.b16 %v635, %v634
      %v644 = vpack.c.b16 %v637, %v636
      %v645 = vpack.c.b16 %v639, %v638
      %v646 = vpack.c.b16 %v641, %v640
      %v647 = vpack.c.b16 %v642, %v642
      %vm652 = vcmask 588800
      %v654 = vsel %vm652, %v593, 0
      %v657 = vsel %vm652, %v594, 0
      %v660 = vsel %vm652, %v595, 0
      %v663 = vsel %vm652, %v596, 0
      %v666 = vsel %vm652, %v597, 0
      %v669 = vsel %vm652, %v598, 0
      %v672 = vsel %vm652, %v599, 0
      %v675 = vsel %vm652, %v600, 0
      %v678 = vsel %vm652, %v601, 0
      %v681 = vsel %vm652, %v602, 0
      %v684 = vsel %vm652, %v603, 0
      %v687 = vsel %vm652, %v604, 0
      %v690 = vsel %vm652, %v605, 0
      %v693 = vsel %vm652, %v606, 0
      %v696 = vsel %vm652, %v607, 0
      %v699 = vsel %vm652, %v608, 0
      %v702 = vsel %vm652, %v609, 0
      %v705 = vsel %vm652, %v610, 0
      %v708 = vsel %vm652, %v611, 0
      %v711 = vsel %vm652, %v612, 0
      %v714 = vsel %vm652, %v613, 0
      %v717 = vsel %vm652, %v614, 0
      %v720 = vsel %vm652, %v615, 0
      %v723 = vsel %vm652, %v616, 0
      %v726 = vsel %vm652, %v617, 0
      %v729 = vsel %vm652, %v618, 0
      %v732 = vsel %vm652, %v619, 0
      %v735 = vsel %vm652, %v620, 0
      %v738 = vsel %vm652, %v621, 0
      %v741 = vsel %vm652, %v622, 0
      %v744 = vsel %vm652, %v623, 0
      %v747 = vsel %vm652, %v624, 0
      %vm749 = vcmask 1043456
      %v751 = vsel %vm749, %v647, 0
      %753 = vmatpush.bf16.msra.mxu0 0
      %754 = vmatpush.bf16.msra.mxu0 0
      %755 = vmatpush.bf16.msra.mxu0 0
      %756 = vmatpush.bf16.msra.mxu0 %v751
      %757 = vmatpush.bf16.msra.mxu0 %v646
      %758 = vmatpush.bf16.msra.mxu0 %v645
      %759 = vmatpush.bf16.msra.mxu0 %v644
      %760 = vmatpush.bf16.msra.mxu0 %v643
      %761 = vmatmul.bf16.gmra.mxu0 %v654
      %v762 = vpop.f32.mrf.mxu0
      %v763 = vadd.f32 0.0, %v762
      %v764 = vpop.f32.mrf.mxu0
      %v765 = vadd.f32 0.0, %v764
      %766 = vmatmul.bf16.gmra.mxu0 %v657
      %v767 = vpop.f32.mrf.mxu0
      %v768 = vadd.f32 0.0, %v767
      %v769 = vpop.f32.mrf.mxu0
      %v770 = vadd.f32 0.0, %v769
      %771 = vmatmul.bf16.gmra.mxu0 %v660
      %v772 = vpop.f32.mrf.mxu0
      %v773 = vadd.f32 0.0, %v772
      %v774 = vpop.f32.mrf.mxu0
      %v775 = vadd.f32 0.0, %v774
      %776 = vmatmul.bf16.gmra.mxu0 %v663
      %v777 = vpop.f32.mrf.mxu0
      %v778 = vadd.f32 0.0, %v777
      %v779 = vpop.f32.mrf.mxu0
      %v780 = vadd.f32 0.0, %v779
      %781 = vmatmul.bf16.gmra.mxu0 %v666
      %v782 = vpop.f32.mrf.mxu0
      %v783 = vadd.f32 0.0, %v782
      %v784 = vpop.f32.mrf.mxu0
      %v785 = vadd.f32 0.0, %v784
      %786 = vmatmul.bf16.gmra.mxu0 %v669
      %v787 = vpop.f32.mrf.mxu0
      %v788 = vadd.f32 0.0, %v787
      %v789 = vpop.f32.mrf.mxu0
      %v790 = vadd.f32 0.0, %v789
      %791 = vmatmul.bf16.gmra.mxu0 %v672
      %v792 = vpop.f32.mrf.mxu0
      %v793 = vadd.f32 0.0, %v792
      %v794 = vpop.f32.mrf.mxu0
      %v795 = vadd.f32 0.0, %v794
      %796 = vmatmul.bf16.gmra.mxu0 %v675
      %v797 = vpop.f32.mrf.mxu0
      %v798 = vadd.f32 0.0, %v797
      %v799 = vpop.f32.mrf.mxu0
      %v800 = vadd.f32 0.0, %v799
      %801 = vmatmul.bf16.gmra.mxu0 %v678
      %v802 = vpop.f32.mrf.mxu0
      %v803 = vadd.f32 0.0, %v802
      %v804 = vpop.f32.mrf.mxu0
      %v805 = vadd.f32 0.0, %v804
      %806 = vmatmul.bf16.gmra.mxu0 %v681
      %v807 = vpop.f32.mrf.mxu0
      %v808 = vadd.f32 0.0, %v807
      %v809 = vpop.f32.mrf.mxu0
      %v810 = vadd.f32 0.0, %v809
      %811 = vmatmul.bf16.gmra.mxu0 %v684
      %v812 = vpop.f32.mrf.mxu0
      %v813 = vadd.f32 0.0, %v812
      %v814 = vpop.f32.mrf.mxu0
      %v815 = vadd.f32 0.0, %v814
      %816 = vmatmul.bf16.gmra.mxu0 %v687
      %v817 = vpop.f32.mrf.mxu0
      %v818 = vadd.f32 0.0, %v817
      %v819 = vpop.f32.mrf.mxu0
      %v820 = vadd.f32 0.0, %v819
      %821 = vmatmul.bf16.gmra.mxu0 %v690
      %v822 = vpop.f32.mrf.mxu0
      %v823 = vadd.f32 0.0, %v822
      %v824 = vpop.f32.mrf.mxu0
      %v825 = vadd.f32 0.0, %v824
      %826 = vmatmul.bf16.gmra.mxu0 %v693
      %v827 = vpop.f32.mrf.mxu0
      %v828 = vadd.f32 0.0, %v827
      %v829 = vpop.f32.mrf.mxu0
      %v830 = vadd.f32 0.0, %v829
      %831 = vmatmul.bf16.gmra.mxu0 %v696
      %v832 = vpop.f32.mrf.mxu0
      %v833 = vadd.f32 0.0, %v832
      %v834 = vpop.f32.mrf.mxu0
      %v835 = vadd.f32 0.0, %v834
      %836 = vmatmul.bf16.gmra.mxu0 %v699
      %v837 = vpop.f32.mrf.mxu0
      %v838 = vadd.f32 0.0, %v837
      %v839 = vpop.f32.mrf.mxu0
      %v840 = vadd.f32 0.0, %v839
      %841 = vmatmul.bf16.gmra.mxu0 %v702
      %v842 = vpop.f32.mrf.mxu0
      %v843 = vadd.f32 0.0, %v842
      %v844 = vpop.f32.mrf.mxu0
      %v845 = vadd.f32 0.0, %v844
      %846 = vmatmul.bf16.gmra.mxu0 %v705
      %v847 = vpop.f32.mrf.mxu0
      %v848 = vadd.f32 0.0, %v847
      %v849 = vpop.f32.mrf.mxu0
      %v850 = vadd.f32 0.0, %v849
      %851 = vmatmul.bf16.gmra.mxu0 %v708
      %v852 = vpop.f32.mrf.mxu0
      %v853 = vadd.f32 0.0, %v852
      %v854 = vpop.f32.mrf.mxu0
      %v855 = vadd.f32 0.0, %v854
      %856 = vmatmul.bf16.gmra.mxu0 %v711
      %v857 = vpop.f32.mrf.mxu0
      %v858 = vadd.f32 0.0, %v857
      %v859 = vpop.f32.mrf.mxu0
      %v860 = vadd.f32 0.0, %v859
      %861 = vmatmul.bf16.gmra.mxu0 %v714
      %v862 = vpop.f32.mrf.mxu0
      %v863 = vadd.f32 0.0, %v862
      %v864 = vpop.f32.mrf.mxu0
      %v865 = vadd.f32 0.0, %v864
      %866 = vmatmul.bf16.gmra.mxu0 %v717
      %v867 = vpop.f32.mrf.mxu0
      %v868 = vadd.f32 0.0, %v867
      %v869 = vpop.f32.mrf.mxu0
      %v870 = vadd.f32 0.0, %v869
      %871 = vmatmul.bf16.gmra.mxu0 %v720
      %v872 = vpop.f32.mrf.mxu0
      %v873 = vadd.f32 0.0, %v872
      %v874 = vpop.f32.mrf.mxu0
      %v875 = vadd.f32 0.0, %v874
      %876 = vmatmul.bf16.gmra.mxu0 %v723
      %v877 = vpop.f32.mrf.mxu0
      %v878 = vadd.f32 0.0, %v877
      %v879 = vpop.f32.mrf.mxu0
      %v880 = vadd.f32 0.0, %v879
      %881 = vmatmul.bf16.gmra.mxu0 %v726
      %v882 = vpop.f32.mrf.mxu0
      %v883 = vadd.f32 0.0, %v882
      %v884 = vpop.f32.mrf.mxu0
      %v885 = vadd.f32 0.0, %v884
      %886 = vmatmul.bf16.gmra.mxu0 %v729
      %v887 = vpop.f32.mrf.mxu0
      %v888 = vadd.f32 0.0, %v887
      %v889 = vpop.f32.mrf.mxu0
      %v890 = vadd.f32 0.0, %v889
      %891 = vmatmul.bf16.gmra.mxu0 %v732
      %v892 = vpop.f32.mrf.mxu0
      %v893 = vadd.f32 0.0, %v892
      %v894 = vpop.f32.mrf.mxu0
      %v895 = vadd.f32 0.0, %v894
      %896 = vmatmul.bf16.gmra.mxu0 %v735
      %v897 = vpop.f32.mrf.mxu0
      %v898 = vadd.f32 0.0, %v897
      %v899 = vpop.f32.mrf.mxu0
      %v900 = vadd.f32 0.0, %v899
      %901 = vmatmul.bf16.gmra.mxu0 %v738
      %v902 = vpop.f32.mrf.mxu0
      %v903 = vadd.f32 0.0, %v902
      %v904 = vpop.f32.mrf.mxu0
      %v905 = vadd.f32 0.0, %v904
      %906 = vmatmul.bf16.gmra.mxu0 %v741
      %v907 = vpop.f32.mrf.mxu0
      %v908 = vadd.f32 0.0, %v907
      %v909 = vpop.f32.mrf.mxu0
      %v910 = vadd.f32 0.0, %v909
      %911 = vmatmul.bf16.gmra.mxu0 %v744
      %v912 = vpop.f32.mrf.mxu0
      %v913 = vadd.f32 0.0, %v912
      %v914 = vpop.f32.mrf.mxu0
      %v915 = vadd.f32 0.0, %v914
      %916 = vmatmul.bf16.gmra.mxu0 %v747
      %v917 = vpop.f32.mrf.mxu0
      %v918 = vadd.f32 0.0, %v917
      %v919 = vpop.f32.mrf.mxu0
      %v920 = vadd.f32 0.0, %v919
      %921 = vdwg.mxu0
      %v922 = vadd.f32 %v328, %v763
      %v923 = vadd.f32 %v329, %v765
      %v924 = vadd.f32 %v330, %v768
      %v925 = vadd.f32 %v331, %v770
      %v926 = vadd.f32 %v332, %v773
      %v927 = vadd.f32 %v333, %v775
      %v928 = vadd.f32 %v334, %v778
      %v929 = vadd.f32 %v335, %v780
      %v930 = vadd.f32 %v336, %v783
      %v931 = vadd.f32 %v337, %v785
      %v932 = vadd.f32 %v338, %v788
      %v933 = vadd.f32 %v339, %v790
      %v934 = vadd.f32 %v340, %v793
      %v935 = vadd.f32 %v341, %v795
      %v936 = vadd.f32 %v342, %v798
      %v937 = vadd.f32 %v343, %v800
      %v938 = vadd.f32 %v344, %v803
      %v939 = vadd.f32 %v345, %v805
      %v940 = vadd.f32 %v346, %v808
      %v941 = vadd.f32 %v347, %v810
      %v942 = vadd.f32 %v348, %v813
      %v943 = vadd.f32 %v349, %v815
      %v944 = vadd.f32 %v350, %v818
      %v945 = vadd.f32 %v351, %v820
      %v946 = vadd.f32 %v352, %v823
      %v947 = vadd.f32 %v353, %v825
      %v948 = vadd.f32 %v354, %v828
      %v949 = vadd.f32 %v355, %v830
      %v950 = vadd.f32 %v356, %v833
      %v951 = vadd.f32 %v357, %v835
      %v952 = vadd.f32 %v358, %v838
      %v953 = vadd.f32 %v359, %v840
      %v954 = vadd.f32 %v360, %v843
      %v955 = vadd.f32 %v361, %v845
      %v956 = vadd.f32 %v362, %v848
      %v957 = vadd.f32 %v363, %v850
      %v958 = vadd.f32 %v364, %v853
      %v959 = vadd.f32 %v365, %v855
      %v960 = vadd.f32 %v366, %v858
      %v961 = vadd.f32 %v367, %v860
      %v962 = vadd.f32 %v368, %v863
      %v963 = vadd.f32 %v369, %v865
      %v964 = vadd.f32 %v370, %v868
      %v965 = vadd.f32 %v371, %v870
      %v966 = vadd.f32 %v372, %v873
      %v967 = vadd.f32 %v373, %v875
      %v968 = vadd.f32 %v374, %v878
      %v969 = vadd.f32 %v375, %v880
      %v970 = vadd.f32 %v376, %v883
      %v971 = vadd.f32 %v377, %v885
      %v972 = vadd.f32 %v378, %v888
      %v973 = vadd.f32 %v379, %v890
      %v974 = vadd.f32 %v380, %v893
      %v975 = vadd.f32 %v381, %v895
      %v976 = vadd.f32 %v382, %v898
      %v977 = vadd.f32 %v383, %v900
      %v978 = vadd.f32 %v384, %v903
      %v979 = vadd.f32 %v385, %v905
      %v980 = vadd.f32 %v386, %v908
      %v981 = vadd.f32 %v387, %v910
      %v982 = vadd.f32 %v388, %v913
      %v983 = vadd.f32 %v389, %v915
      %v984 = vadd.f32 %v390, %v918
      %v985 = vadd.f32 %v391, %v920
      %986 = vst [vmem:[#allocation2] sm:$0xff] %v922
      %987 = vst [vmem:[#allocation2 + $0x8] sm:$0xff] %v923
      %988 = vst [vmem:[#allocation2 + $0x10] sm:$0xff] %v924
      %989 = vst [vmem:[#allocation2 + $0x18] sm:$0xff] %v925
      %990 = vst [vmem:[#allocation2 + $0x20] sm:$0xff] %v926
      %991 = vst [vmem:[#allocation2 + $0x28] sm:$0xff] %v927
      %992 = vst [vmem:[#allocation2 + $0x30] sm:$0xff] %v928
      %993 = vst [vmem:[#allocation2 + $0x38] sm:$0xff] %v929
      %994 = vst [vmem:[#allocation2 + $0x40] sm:$0xff] %v930
      %995 = vst [vmem:[#allocation2 + $0x48] sm:$0xff] %v931
      %996 = vst [vmem:[#allocation2 + $0x50] sm:$0xff] %v932
      %997 = vst [vmem:[#allocation2 + $0x58] sm:$0xff] %v933
      %998 = vst [vmem:[#allocation2 + $0x60] sm:$0xff] %v934
      %999 = vst [vmem:[#allocation2 + $0x68] sm:$0xff] %v935
      %1000 = vst [vmem:[#allocation2 + $0x70] sm:$0xff] %v936
      %1001 = vst [vmem:[#allocation2 + $0x78] sm:$0xff] %v937
      %1002 = vst [vmem:[#allocation2 + $0x80] sm:$0xff] %v938
      %1003 = vst [vmem:[#allocation2 + $0x88] sm:$0xff] %v939
      %1004 = vst [vmem:[#allocation2 + $0x90] sm:$0xff] %v940
      %1005 = vst [vmem:[#allocation2 + $0x98] sm:$0xff] %v941
      %1006 = vst [vmem:[#allocation2 + $0xa0] sm:$0xff] %v942
      %1007 = vst [vmem:[#allocation2 + $0xa8] sm:$0xff] %v943
      %1008 = vst [vmem:[#allocation2 + $0xb0] sm:$0xff] %v944
      %1009 = vst [vmem:[#allocation2 + $0xb8] sm:$0xff] %v945
      %1010 = vst [vmem:[#allocation2 + $0xc0] sm:$0xff] %v946
      %1011 = vst [vmem:[#allocation2 + $0xc8] sm:$0xff] %v947
      %1012 = vst [vmem:[#allocation2 + $0xd0] sm:$0xff] %v948
      %1013 = vst [vmem:[#allocation2 + $0xd8] sm:$0xff] %v949
      %1014 = vst [vmem:[#allocation2 + $0xe0] sm:$0xff] %v950
      %1015 = vst [vmem:[#allocation2 + $0xe8] sm:$0xff] %v951
      %1016 = vst [vmem:[#allocation2 + $0xf0] sm:$0xff] %v952
      %1017 = vst [vmem:[#allocation2 + $0xf8] sm:$0xff] %v953
      %1018 = vst [vmem:[#allocation2 + $0x100] sm:$0xff] %v954
      %1019 = vst [vmem:[#allocation2 + $0x108] sm:$0xff] %v955
      %1020 = vst [vmem:[#allocation2 + $0x110] sm:$0xff] %v956
      %1021 = vst [vmem:[#allocation2 + $0x118] sm:$0xff] %v957
      %1022 = vst [vmem:[#allocation2 + $0x120] sm:$0xff] %v958
      %1023 = vst [vmem:[#allocation2 + $0x128] sm:$0xff] %v959
      %1024 = vst [vmem:[#allocation2 + $0x130] sm:$0xff] %v960
      %1025 = vst [vmem:[#allocation2 + $0x138] sm:$0xff] %v961
      %1026 = vst [vmem:[#allocation2 + $0x140] sm:$0xff] %v962
      %1027 = vst [vmem:[#allocation2 + $0x148] sm:$0xff] %v963
      %1028 = vst [vmem:[#allocation2 + $0x150] sm:$0xff] %v964
      %1029 = vst [vmem:[#allocation2 + $0x158] sm:$0xff] %v965
      %1030 = vst [vmem:[#allocation2 + $0x160] sm:$0xff] %v966
      %1031 = vst [vmem:[#allocation2 + $0x168] sm:$0xff] %v967
      %1032 = vst [vmem:[#allocation2 + $0x170] sm:$0xff] %v968
      %1033 = vst [vmem:[#allocation2 + $0x178] sm:$0xff] %v969
      %1034 = vst [vmem:[#allocation2 + $0x180] sm:$0xff] %v970
      %1035 = vst [vmem:[#allocation2 + $0x188] sm:$0xff] %v971
      %1036 = vst [vmem:[#allocation2 + $0x190] sm:$0xff] %v972
      %1037 = vst [vmem:[#allocation2 + $0x198] sm:$0xff] %v973
      %1038 = vst [vmem:[#allocation2 + $0x1a0] sm:$0xff] %v974
      %1039 = vst [vmem:[#allocation2 + $0x1a8] sm:$0xff] %v975
      %1040 = vst [vmem:[#allocation2 + $0x1b0] sm:$0xff] %v976
      %1041 = vst [vmem:[#allocation2 + $0x1b8] sm:$0xff] %v977
      %1042 = vst [vmem:[#allocation2 + $0x1c0] sm:$0xff] %v978
      %1043 = vst [vmem:[#allocation2 + $0x1c8] sm:$0xff] %v979
      %1044 = vst [vmem:[#allocation2 + $0x1d0] sm:$0xff] %v980
      %1045 = vst [vmem:[#allocation2 + $0x1d8] sm:$0xff] %v981
      %1046 = vst [vmem:[#allocation2 + $0x1e0] sm:$0xff] %v982
      %1047 = vst [vmem:[#allocation2 + $0x1e8] sm:$0xff] %v983
      %1048 = vst [vmem:[#allocation2 + $0x1f0] sm:$0xff] %v984
      %1049 = vst [vmem:[#allocation2 + $0x1f8] sm:$0xff] %v985
      // Predicated region
      $region37: #{basic_conv2d_apply.1} parent=31 // pred_check
        %p1050 = pneg %p260
      $region38: #{basic_conv2d_apply.1} parent=31 // pred_check_branch
        %1052 = sbr.rel (%p1050) target = $region40
      $region39: #{basic_conv2d_apply.1} parent=31 // pred_region
        %v1053 = vld [vmem:[#allocation2] sm:$0xff]
        %v1054 = vld [vmem:[#allocation2 + $0x8] sm:$0xff]
        %v1055 = vld [vmem:[#allocation2 + $0x10] sm:$0xff]
        %v1056 = vld [vmem:[#allocation2 + $0x18] sm:$0xff]
        %v1057 = vld [vmem:[#allocation2 + $0x20] sm:$0xff]
        %v1058 = vld [vmem:[#allocation2 + $0x28] sm:$0xff]
        %v1059 = vld [vmem:[#allocation2 + $0x30] sm:$0xff]
        %v1060 = vld [vmem:[#allocation2 + $0x38] sm:$0xff]
        %v1061 = vld [vmem:[#allocation2 + $0x40] sm:$0xff]
        %v1062 = vld [vmem:[#allocation2 + $0x48] sm:$0xff]
        %v1063 = vld [vmem:[#allocation2 + $0x50] sm:$0xff]
        %v1064 = vld [vmem:[#allocation2 + $0x58] sm:$0xff]
        %v1065 = vld [vmem:[#allocation2 + $0x60] sm:$0xff]
        %v1066 = vld [vmem:[#allocation2 + $0x68] sm:$0xff]
        %v1067 = vld [vmem:[#allocation2 + $0x70] sm:$0xff]
        %v1068 = vld [vmem:[#allocation2 + $0x78] sm:$0xff]
        %v1069 = vld [vmem:[#allocation2 + $0x80] sm:$0xff]
        %v1070 = vld [vmem:[#allocation2 + $0x88] sm:$0xff]
        %v1071 = vld [vmem:[#allocation2 + $0x90] sm:$0xff]
        %v1072 = vld [vmem:[#allocation2 + $0x98] sm:$0xff]
        %v1073 = vld [vmem:[#allocation2 + $0xa0] sm:$0xff]
        %v1074 = vld [vmem:[#allocation2 + $0xa8] sm:$0xff]
        %v1075 = vld [vmem:[#allocation2 + $0xb0] sm:$0xff]
        %v1076 = vld [vmem:[#allocation2 + $0xb8] sm:$0xff]
        %v1077 = vld [vmem:[#allocation2 + $0xc0] sm:$0xff]
        %v1078 = vld [vmem:[#allocation2 + $0xc8] sm:$0xff]
        %v1079 = vld [vmem:[#allocation2 + $0xd0] sm:$0xff]
        %v1080 = vld [vmem:[#allocation2 + $0xd8] sm:$0xff]
        %v1081 = vld [vmem:[#allocation2 + $0xe0] sm:$0xff]
        %v1082 = vld [vmem:[#allocation2 + $0xe8] sm:$0xff]
        %v1083 = vld [vmem:[#allocation2 + $0xf0] sm:$0xff]
        %v1084 = vld [vmem:[#allocation2 + $0xf8] sm:$0xff]
        %v1085 = vld [vmem:[#allocation2 + $0x100] sm:$0xff]
        %v1086 = vld [vmem:[#allocation2 + $0x108] sm:$0xff]
        %v1087 = vld [vmem:[#allocation2 + $0x110] sm:$0xff]
        %v1088 = vld [vmem:[#allocation2 + $0x118] sm:$0xff]
        %v1089 = vld [vmem:[#allocation2 + $0x120] sm:$0xff]
        %v1090 = vld [vmem:[#allocation2 + $0x128] sm:$0xff]
        %v1091 = vld [vmem:[#allocation2 + $0x130] sm:$0xff]
        %v1092 = vld [vmem:[#allocation2 + $0x138] sm:$0xff]
        %v1093 = vld [vmem:[#allocation2 + $0x140] sm:$0xff]
        %v1094 = vld [vmem:[#allocation2 + $0x148] sm:$0xff]
        %v1095 = vld [vmem:[#allocation2 + $0x150] sm:$0xff]
        %v1096 = vld [vmem:[#allocation2 + $0x158] sm:$0xff]
        %v1097 = vld [vmem:[#allocation2 + $0x160] sm:$0xff]
        %v1098 = vld [vmem:[#allocation2 + $0x168] sm:$0xff]
        %v1099 = vld [vmem:[#allocation2 + $0x170] sm:$0xff]
        %v1100 = vld [vmem:[#allocation2 + $0x178] sm:$0xff]
        %v1101 = vld [vmem:[#allocation2 + $0x180] sm:$0xff]
        %v1102 = vld [vmem:[#allocation2 + $0x188] sm:$0xff]
        %v1103 = vld [vmem:[#allocation2 + $0x190] sm:$0xff]
        %v1104 = vld [vmem:[#allocation2 + $0x198] sm:$0xff]
        %v1105 = vld [vmem:[#allocation2 + $0x1a0] sm:$0xff]
        %v1106 = vld [vmem:[#allocation2 + $0x1a8] sm:$0xff]
        %v1107 = vld [vmem:[#allocation2 + $0x1b0] sm:$0xff]
        %v1108 = vld [vmem:[#allocation2 + $0x1b8] sm:$0xff]
        %v1109 = vld [vmem:[#allocation2 + $0x1c0] sm:$0xff]
        %v1110 = vld [vmem:[#allocation2 + $0x1c8] sm:$0xff]
        %v1111 = vld [vmem:[#allocation2 + $0x1d0] sm:$0xff]
        %v1112 = vld [vmem:[#allocation2 + $0x1d8] sm:$0xff]
        %v1113 = vld [vmem:[#allocation2 + $0x1e0] sm:$0xff]
        %v1114 = vld [vmem:[#allocation2 + $0x1e8] sm:$0xff]
        %v1115 = vld [vmem:[#allocation2 + $0x1f0] sm:$0xff]
        %v1116 = vld [vmem:[#allocation2 + $0x1f8] sm:$0xff]
        %v1117 = vld [vmem:[%s249] sm:$0x1]
        %v1119 = vperm.slane %v1117, 0
        %v1121 = vadd.f32 %v1053, %v1119
        %v1122 = vadd.f32 %v1054, %v1119
        %v1123 = vadd.f32 %v1055, %v1119
        %v1124 = vadd.f32 %v1056, %v1119
        %v1125 = vadd.f32 %v1057, %v1119
        %v1126 = vadd.f32 %v1058, %v1119
        %v1127 = vadd.f32 %v1059, %v1119
        %v1128 = vadd.f32 %v1060, %v1119
        %v1129 = vadd.f32 %v1061, %v1119
        %v1130 = vadd.f32 %v1062, %v1119
        %v1131 = vadd.f32 %v1063, %v1119
        %v1132 = vadd.f32 %v1064, %v1119
        %v1133 = vadd.f32 %v1065, %v1119
        %v1134 = vadd.f32 %v1066, %v1119
        %v1135 = vadd.f32 %v1067, %v1119
        %v1136 = vadd.f32 %v1068, %v1119
        %v1137 = vadd.f32 %v1069, %v1119
        %v1138 = vadd.f32 %v1070, %v1119
        %v1139 = vadd.f32 %v1071, %v1119
        %v1140 = vadd.f32 %v1072, %v1119
        %v1141 = vadd.f32 %v1073, %v1119
        %v1142 = vadd.f32 %v1074, %v1119
        %v1143 = vadd.f32 %v1075, %v1119
        %v1144 = vadd.f32 %v1076, %v1119
        %v1145 = vadd.f32 %v1077, %v1119
        %v1146 = vadd.f32 %v1078, %v1119
        %v1147 = vadd.f32 %v1079, %v1119
        %v1148 = vadd.f32 %v1080, %v1119
        %v1149 = vadd.f32 %v1081, %v1119
        %v1150 = vadd.f32 %v1082, %v1119
        %v1151 = vadd.f32 %v1083, %v1119
        %v1152 = vadd.f32 %v1084, %v1119
        %v1153 = vadd.f32 %v1085, %v1119
        %v1154 = vadd.f32 %v1086, %v1119
        %v1155 = vadd.f32 %v1087, %v1119
        %v1156 = vadd.f32 %v1088, %v1119
        %v1157 = vadd.f32 %v1089, %v1119
        %v1158 = vadd.f32 %v1090, %v1119
        %v1159 = vadd.f32 %v1091, %v1119
        %v1160 = vadd.f32 %v1092, %v1119
        %v1161 = vadd.f32 %v1093, %v1119
        %v1162 = vadd.f32 %v1094, %v1119
        %v1163 = vadd.f32 %v1095, %v1119
        %v1164 = vadd.f32 %v1096, %v1119
        %v1165 = vadd.f32 %v1097, %v1119
        %v1166 = vadd.f32 %v1098, %v1119
        %v1167 = vadd.f32 %v1099, %v1119
        %v1168 = vadd.f32 %v1100, %v1119
        %v1169 = vadd.f32 %v1101, %v1119
        %v1170 = vadd.f32 %v1102, %v1119
        %v1171 = vadd.f32 %v1103, %v1119
        %v1172 = vadd.f32 %v1104, %v1119
        %v1173 = vadd.f32 %v1105, %v1119
        %v1174 = vadd.f32 %v1106, %v1119
        %v1175 = vadd.f32 %v1107, %v1119
        %v1176 = vadd.f32 %v1108, %v1119
        %v1177 = vadd.f32 %v1109, %v1119
        %v1178 = vadd.f32 %v1110, %v1119
        %v1179 = vadd.f32 %v1111, %v1119
        %v1180 = vadd.f32 %v1112, %v1119
        %v1181 = vadd.f32 %v1113, %v1119
        %v1182 = vadd.f32 %v1114, %v1119
        %v1183 = vadd.f32 %v1115, %v1119
        %v1184 = vadd.f32 %v1116, %v1119
        %v1185 = vmax.f32 %v1121, 0.0
        %v1186 = vmax.f32 %v1122, 0.0
        %v1187 = vmax.f32 %v1123, 0.0
        %v1188 = vmax.f32 %v1124, 0.0
        %v1189 = vmax.f32 %v1125, 0.0
        %v1190 = vmax.f32 %v1126, 0.0
        %v1191 = vmax.f32 %v1127, 0.0
        %v1192 = vmax.f32 %v1128, 0.0
        %v1193 = vmax.f32 %v1129, 0.0
        %v1194 = vmax.f32 %v1130, 0.0
        %v1195 = vmax.f32 %v1131, 0.0
        %v1196 = vmax.f32 %v1132, 0.0
        %v1197 = vmax.f32 %v1133, 0.0
        %v1198 = vmax.f32 %v1134, 0.0
        %v1199 = vmax.f32 %v1135, 0.0
        %v1200 = vmax.f32 %v1136, 0.0
        %v1201 = vmax.f32 %v1137, 0.0
        %v1202 = vmax.f32 %v1138, 0.0
        %v1203 = vmax.f32 %v1139, 0.0
        %v1204 = vmax.f32 %v1140, 0.0
        %v1205 = vmax.f32 %v1141, 0.0
        %v1206 = vmax.f32 %v1142, 0.0
        %v1207 = vmax.f32 %v1143, 0.0
        %v1208 = vmax.f32 %v1144, 0.0
        %v1209 = vmax.f32 %v1145, 0.0
        %v1210 = vmax.f32 %v1146, 0.0
        %v1211 = vmax.f32 %v1147, 0.0
        %v1212 = vmax.f32 %v1148, 0.0
        %v1213 = vmax.f32 %v1149, 0.0
        %v1214 = vmax.f32 %v1150, 0.0
        %v1215 = vmax.f32 %v1151, 0.0
        %v1216 = vmax.f32 %v1152, 0.0
        %v1217 = vmax.f32 %v1153, 0.0
        %v1218 = vmax.f32 %v1154, 0.0
        %v1219 = vmax.f32 %v1155, 0.0
        %v1220 = vmax.f32 %v1156, 0.0
        %v1221 = vmax.f32 %v1157, 0.0
        %v1222 = vmax.f32 %v1158, 0.0
        %v1223 = vmax.f32 %v1159, 0.0
        %v1224 = vmax.f32 %v1160, 0.0
        %v1225 = vmax.f32 %v1161, 0.0
        %v1226 = vmax.f32 %v1162, 0.0
        %v1227 = vmax.f32 %v1163, 0.0
        %v1228 = vmax.f32 %v1164, 0.0
        %v1229 = vmax.f32 %v1165, 0.0
        %v1230 = vmax.f32 %v1166, 0.0
        %v1231 = vmax.f32 %v1167, 0.0
        %v1232 = vmax.f32 %v1168, 0.0
        %v1233 = vmax.f32 %v1169, 0.0
        %v1234 = vmax.f32 %v1170, 0.0
        %v1235 = vmax.f32 %v1171, 0.0
        %v1236 = vmax.f32 %v1172, 0.0
        %v1237 = vmax.f32 %v1173, 0.0
        %v1238 = vmax.f32 %v1174, 0.0
        %v1239 = vmax.f32 %v1175, 0.0
        %v1240 = vmax.f32 %v1176, 0.0
        %v1241 = vmax.f32 %v1177, 0.0
        %v1242 = vmax.f32 %v1178, 0.0
        %v1243 = vmax.f32 %v1179, 0.0
        %v1244 = vmax.f32 %v1180, 0.0
        %v1245 = vmax.f32 %v1181, 0.0
        %v1246 = vmax.f32 %v1182, 0.0
        %v1247 = vmax.f32 %v1183, 0.0
        %v1248 = vmax.f32 %v1184, 0.0
        %1249 = vst [vmem:[%s257] sm:$0xff] %v1185
        %1250 = vst [vmem:[%s257 + $0x8] sm:$0xff] %v1186
        %1251 = vst [vmem:[%s257 + $0x10] sm:$0xff] %v1187
        %1252 = vst [vmem:[%s257 + $0x18] sm:$0xff] %v1188
        %1253 = vst [vmem:[%s257 + $0x20] sm:$0xff] %v1189
        %1254 = vst [vmem:[%s257 + $0x28] sm:$0xff] %v1190
        %1255 = vst [vmem:[%s257 + $0x30] sm:$0xff] %v1191
        %1256 = vst [vmem:[%s257 + $0x38] sm:$0xff] %v1192
        %1257 = vst [vmem:[%s257 + $0x40] sm:$0xff] %v1193
        %1258 = vst [vmem:[%s257 + $0x48] sm:$0xff] %v1194
        %1259 = vst [vmem:[%s257 + $0x50] sm:$0xff] %v1195
        %1260 = vst [vmem:[%s257 + $0x58] sm:$0xff] %v1196
        %1261 = vst [vmem:[%s257 + $0x60] sm:$0xff] %v1197
        %1262 = vst [vmem:[%s257 + $0x68] sm:$0xff] %v1198
        %1263 = vst [vmem:[%s257 + $0x70] sm:$0xff] %v1199
        %1264 = vst [vmem:[%s257 + $0x78] sm:$0xff] %v1200
        %1265 = vst [vmem:[%s257 + $0x80] sm:$0xff] %v1201
        %1266 = vst [vmem:[%s257 + $0x88] sm:$0xff] %v1202
        %1267 = vst [vmem:[%s257 + $0x90] sm:$0xff] %v1203
        %1268 = vst [vmem:[%s257 + $0x98] sm:$0xff] %v1204
        %1269 = vst [vmem:[%s257 + $0xa0] sm:$0xff] %v1205
        %1270 = vst [vmem:[%s257 + $0xa8] sm:$0xff] %v1206
        %1271 = vst [vmem:[%s257 + $0xb0] sm:$0xff] %v1207
        %1272 = vst [vmem:[%s257 + $0xb8] sm:$0xff] %v1208
        %1273 = vst [vmem:[%s257 + $0xc0] sm:$0xff] %v1209
        %1274 = vst [vmem:[%s257 + $0xc8] sm:$0xff] %v1210
        %1275 = vst [vmem:[%s257 + $0xd0] sm:$0xff] %v1211
        %1276 = vst [vmem:[%s257 + $0xd8] sm:$0xff] %v1212
        %1277 = vst [vmem:[%s257 + $0xe0] sm:$0xff] %v1213
        %1278 = vst [vmem:[%s257 + $0xe8] sm:$0xff] %v1214
        %1279 = vst [vmem:[%s257 + $0xf0] sm:$0xff] %v1215
        %1280 = vst [vmem:[%s257 + $0xf8] sm:$0xff] %v1216
        %1281 = vst [vmem:[%s257 + $0x100] sm:$0xff] %v1217
        %1282 = vst [vmem:[%s257 + $0x108] sm:$0xff] %v1218
        %1283 = vst [vmem:[%s257 + $0x110] sm:$0xff] %v1219
        %1284 = vst [vmem:[%s257 + $0x118] sm:$0xff] %v1220
        %1285 = vst [vmem:[%s257 + $0x120] sm:$0xff] %v1221
        %1286 = vst [vmem:[%s257 + $0x128] sm:$0xff] %v1222
        %1287 = vst [vmem:[%s257 + $0x130] sm:$0xff] %v1223
        %1288 = vst [vmem:[%s257 + $0x138] sm:$0xff] %v1224
        %1289 = vst [vmem:[%s257 + $0x140] sm:$0xff] %v1225
        %1290 = vst [vmem:[%s257 + $0x148] sm:$0xff] %v1226
        %1291 = vst [vmem:[%s257 + $0x150] sm:$0xff] %v1227
        %1292 = vst [vmem:[%s257 + $0x158] sm:$0xff] %v1228
        %1293 = vst [vmem:[%s257 + $0x160] sm:$0xff] %v1229
        %1294 = vst [vmem:[%s257 + $0x168] sm:$0xff] %v1230
        %1295 = vst [vmem:[%s257 + $0x170] sm:$0xff] %v1231
        %1296 = vst [vmem:[%s257 + $0x178] sm:$0xff] %v1232
        %1297 = vst [vmem:[%s257 + $0x180] sm:$0xff] %v1233
        %1298 = vst [vmem:[%s257 + $0x188] sm:$0xff] %v1234
        %1299 = vst [vmem:[%s257 + $0x190] sm:$0xff] %v1235
        %1300 = vst [vmem:[%s257 + $0x198] sm:$0xff] %v1236
        %1301 = vst [vmem:[%s257 + $0x1a0] sm:$0xff] %v1237
        %1302 = vst [vmem:[%s257 + $0x1a8] sm:$0xff] %v1238
        %1303 = vst [vmem:[%s257 + $0x1b0] sm:$0xff] %v1239
        %1304 = vst [vmem:[%s257 + $0x1b8] sm:$0xff] %v1240
        %1305 = vst [vmem:[%s257 + $0x1c0] sm:$0xff] %v1241
        %1306 = vst [vmem:[%s257 + $0x1c8] sm:$0xff] %v1242
        %1307 = vst [vmem:[%s257 + $0x1d0] sm:$0xff] %v1243
        %1308 = vst [vmem:[%s257 + $0x1d8] sm:$0xff] %v1244
        %1309 = vst [vmem:[%s257 + $0x1e0] sm:$0xff] %v1245
        %1310 = vst [vmem:[%s257 + $0x1e8] sm:$0xff] %v1246
        %1311 = vst [vmem:[%s257 + $0x1f0] sm:$0xff] %v1247
        %1312 = vst [vmem:[%s257 + $0x1f8] sm:$0xff] %v1248
      $region40: #{basic_conv2d_apply.1} parent=31 // pred_fallthru
        _
      %s1313 = smul.u32 64, %s19
      %p1314 = scmp.lt.s32.totalorder %s1313, 255
      %s1315 = scalar_select %p1314, %s1313, 255
      %p1316 = scmp.lt.s32.totalorder %s20, 0
      %s1317 = scalar_select %p1316, %s20, 0
      %s1318 = sadd.s32 %s1317, %s1315
      %s1319 = smul.addr %s1318, 8
      %s1320 = scalar_lea.vmem %s3, %s1319
      // Predicated region
      $region41: #{basic_conv2d_apply.1} parent=31 // pred_check
        %p1321 = pneg %p135
      $region42: #{basic_conv2d_apply.1} parent=31 // pred_check_branch
        %1323 = sbr.rel (%p1321) target = $region44
      $region43: #{basic_conv2d_apply.1} parent=31 // pred_region
        %s1324 = smul.u32 64, %s19
      $region44: #{basic_conv2d_apply.1} parent=31 // pred_fallthru
        _
    $region32: #{basic_conv2d_apply.1} parent=5 // pred_fallthru
      _
    %p1325 = scmp.le.s32.totalorder 2, %s9
    // Predicated region
    $region45: #{basic_conv2d_apply.1} parent=5 // pred_check
      %p1326 = pneg %p1325
    $region46: #{basic_conv2d_apply.1} parent=5 // pred_check_branch
      %1328 = sbr.rel (%p1326) target = $region48
    $region47: #{basic_conv2d_apply.1} parent=5 // pred_region
      %s1329 = ssub.s32 %s9, 2
      // Predicated region
      $region49: #{basic_conv2d_apply.1} parent=47 // pred_check
        %p1330 = pneg %p141
      $region50: #{basic_conv2d_apply.1} parent=47 // pred_check_branch
        %1332 = sbr.rel (%p1330) target = $region52
      $region51: #{basic_conv2d_apply.1} parent=47 // pred_region
        %s1333 = smul.u32 64, %s22
        %p1334 = scmp.lt.s32.totalorder %s1333, 255
        %s1335 = scalar_select %p1334, %s1333, 255
        %p1336 = scmp.lt.s32.totalorder %s23, 0
        %s1337 = scalar_select %p1336, %s23, 0
        %s1338 = sadd.s32 %s1337, %s1335
        %s1339 = smul.addr %s1338, 8
        %s1340 = scalar_lea.vmem %s3, %s1339
      $region52: #{basic_conv2d_apply.1} parent=47 // pred_fallthru
        _
    $region48: #{basic_conv2d_apply.1} parent=5 // pred_fallthru
      _
  $region6: #{basic_conv2d_apply.1} parent=0 // loop_footer
    %s13 = sadd.s32 1, %s9
  $region7: #{basic_conv2d_apply.1} parent=0 // loop_footer_branch
    %8 = sbr.rel target = $region3
  $region8: #{basic_conv2d_apply.1} parent=0 // loop_exit
    _

</llo_original>
